<compile_context>
chip_gen: v5e
topology: v5e:2x2
jax: 0.10.0
libtpu: 0.0.40
codegen_flags: <defaults>
</compile_context>

<pallas_src>
import functools

import jax
import jax.numpy as jnp
from jax.experimental import pallas as pl
from jax.experimental.pallas import tpu as pltpu

IN_DIM = 250    # feature dim; fed unpadded (block last-dim == full array dim)
OUT_DIM = 5
OUT_PAD = 8     # tiny lane pad for the output / weights (5 -> 8)


def _round_up(x, m):
    return (x + m - 1) // m * m


def _cdiv(a, b):
    return (a + b - 1) // b


def ner_kernel(x_ref, w_ref, b_ref, o_ref):
    # x_ref: [tb, 250] f32, w_ref: [250, 8] f32, b_ref: [1, 8] f32,
    # o_ref: [tb, 8] f32.
    z = jnp.dot(x_ref[...], w_ref[...], preferred_element_type=jnp.float32)
    o_ref[...] = jnp.tanh(z + b_ref[...]).astype(o_ref.dtype)


@functools.partial(jax.jit, static_argnames=("block_b",))
def ner_forward(x, w00, b00, *, block_b=8192):
    """tanh(x @ w00 + b00) in float32.  x: [B, 250], w00: [250, 5], b00: [5]."""
    B = x.shape[0]
    x = x.astype(jnp.float32)

    # Pad only the tiny weights/bias to 8 output lanes (one-time, ~10 KB).
    w_p = jnp.pad(w00.astype(jnp.float32), ((0, 0), (0, OUT_PAD - OUT_DIM)))
    b_p = jnp.pad(b00.astype(jnp.float32).reshape(1, OUT_DIM),
                  ((0, 0), (0, OUT_PAD - OUT_DIM)))

    # Pad batch only to a multiple of 8 sublanes (padded rows are sliced away).
    b8 = _round_up(B, 8)
    if b8 != B:
        x = jnp.pad(x, ((0, b8 - B), (0, 0)))

    # Batch tile: multiple of 8, at most block_b, and capped so large batches
    # give >= 4 grid steps (dual-TC streaming on v7x; harmless elsewhere).
    tb = _round_up(max(block_b, 8), 8)
    tb = min(tb, max(8, _round_up(_cdiv(b8, 4), 8)))
    tb = min(tb, b8)
    grid = (_cdiv(b8, tb),)

    out_padded = pl.pallas_call(
        ner_kernel,
        out_shape=jax.ShapeDtypeStruct((b8, OUT_PAD), jnp.float32),
        grid=grid,
        in_specs=[
            pl.BlockSpec((tb, IN_DIM), lambda i: (i, 0)),       # x: stream over batch
            pl.BlockSpec((IN_DIM, OUT_PAD), lambda i: (0, 0)),  # w: VMEM-resident
            pl.BlockSpec((1, OUT_PAD), lambda i: (0, 0)),       # b: VMEM-resident
        ],
        out_specs=pl.BlockSpec((tb, OUT_PAD), lambda i: (i, 0)),
        compiler_params=pltpu.CompilerParams(
            dimension_semantics=("parallel",),     # shard batch tiles across TCs
            vmem_limit_bytes=48 * 1024 * 1024,     # covers tb=8192 double-buffered
        ),
    )(x, w_p, b_p)

    # Slice away batch padding and the 3 zero-bias lanes.
    return out_padded[:B, :OUT_DIM]


if __name__ == "__main__":
    key = jax.random.PRNGKey(0)
    k_x, k_w, k_b = jax.random.split(key, 3)

    w00 = jax.random.normal(k_w, (IN_DIM, OUT_DIM), dtype=jnp.float32)
    b00 = jax.random.normal(k_b, (OUT_DIM,), dtype=jnp.float32)

    # Small, deterministic batches; 13 exercises the non-multiple-of-8 path.
    for B in (8, 13):
        x = jax.random.normal(k_x, (B, IN_DIM), dtype=jnp.float32)
        out = ner_forward(x, w00, b00)
        jax.block_until_ready(out)
        ref = jnp.tanh(x @ w00 + b00)
        assert out.shape == (B, OUT_DIM)
        assert jnp.allclose(out, ref, atol=1e-5, rtol=1e-5)

    # TODO(synk): float64 parameters/inputs are run in float32 (no f64 MXU/VPU on TPU).
    print("KERNEL_OK")
</pallas_src>

<mosaic_0001>
module attributes {stable_mosaic.version = 11 : i64} {
  func.func @ner_kernel(%arg0: i32, %arg1: memref<8x250xf32, #tpu.memory_space<vmem>>, %arg2: memref<250x8xf32, #tpu.memory_space<vmem>>, %arg3: memref<1x8xf32, #tpu.memory_space<vmem>>, %arg4: memref<8x8xf32, #tpu.memory_space<vmem>>) attributes {dimension_semantics = [#tpu.dimension_semantics<parallel>], iteration_bounds = array<i64: 1>, scalar_prefetch = 0 : i64, scratch_operands = 0 : i64, tpu.core_type = #tpu.core_type<tc>, window_params = [{transform_indices = @transform_0, window_bounds = array<i64: 8, 250>}, {pipeline_mode = #tpu.pipeline_mode<synchronous>, transform_indices = @transform_1, window_bounds = array<i64: 250, 8>}, {pipeline_mode = #tpu.pipeline_mode<synchronous>, transform_indices = @transform_2, window_bounds = array<i64: 1, 8>}, {transform_indices = @transform_3, window_bounds = array<i64: 8, 8>}]} {
    %c0 = arith.constant 0 : index
    %c0_0 = arith.constant 0 : index
    %0 = vector.load %arg1[%c0, %c0_0] : memref<8x250xf32, #tpu.memory_space<vmem>>, vector<8x250xf32>
    %c0_1 = arith.constant 0 : index
    %c0_2 = arith.constant 0 : index
    %1 = vector.load %arg2[%c0_1, %c0_2] : memref<250x8xf32, #tpu.memory_space<vmem>>, vector<250x8xf32>
    %cst = arith.constant dense<0.000000e+00> : vector<8x8xf32>
    %2 = tpu.matmul %0, %1, %cst {dimension_numbers = #tpu.dot_dimension_numbers<[1], [0], [0], [1], [0, 0, 1, 1], [], []>} : vector<8x250xf32>, vector<250x8xf32>, vector<8x8xf32> -> vector<8x8xf32>
    %c0_3 = arith.constant 0 : index
    %c0_4 = arith.constant 0 : index
    %3 = vector.load %arg3[%c0_3, %c0_4] : memref<1x8xf32, #tpu.memory_space<vmem>>, vector<1x8xf32>
    %4 = vector.broadcast %3 : vector<1x8xf32> to vector<8x8xf32>
    %5 = arith.addf %2, %4 : vector<8x8xf32>
    %6 = math.tanh %5 : vector<8x8xf32>
    %c0_5 = arith.constant 0 : index
    %c0_6 = arith.constant 0 : index
    %7 = vector.load %arg4[%c0_5, %c0_6] : memref<8x8xf32, #tpu.memory_space<vmem>>, vector<8x8xf32>
    tpu.vector_store %arg4[%c0_5, %c0_6], %6 {strides = array<i32>} : memref<8x8xf32, #tpu.memory_space<vmem>>, vector<8x8xf32>,
    return
  }
  func.func @transform_0(%arg0: i32) -> (i32, i32) {
    %c0_i32 = arith.constant 0 : i32
    %c0_i32_0 = arith.constant 0 : i32
    return %arg0, %c0_i32 : i32, i32
  }
  func.func @transform_1(%arg0: i32) -> (i32, i32) {
    %c0_i32 = arith.constant 0 : i32
    %c0_i32_0 = arith.constant 0 : i32
    %c0_i32_1 = arith.constant 0 : i32
    return %c0_i32, %c0_i32_0 : i32, i32
  }
  func.func @transform_2(%arg0: i32) -> (i32, i32) {
    %c0_i32 = arith.constant 0 : i32
    %c0_i32_0 = arith.constant 0 : i32
    %c0_i32_1 = arith.constant 0 : i32
    return %c0_i32, %c0_i32_0 : i32, i32
  }
  func.func @transform_3(%arg0: i32) -> (i32, i32) {
    %c0_i32 = arith.constant 0 : i32
    %c0_i32_0 = arith.constant 0 : i32
    return %arg0, %c0_i32 : i32, i32
  }
}

</mosaic_0001>

<llo_original>
// kernel: ner_forward.1
$region0: #{ner_forward.1}
  #allocation0 [shape = 'u32[]', space=smem, size = 0x4, offset = 0x4, fixed_abs, tag = 'smem constant byte address 0x4 - core index']
  #allocation1 [shape = 'u32[72,128]{1,0:T(1,128)}', space=vmem, size = 0x9000, scoped, tag = 'internal scratch']
  %s0 = inlined_call_operand.vmem [shape: f32[8,250], index: 0, kind: input, shape index: {}]
  %s1 = inlined_call_operand.vmem [shape: f32[250,8], index: 1, kind: input, shape index: {}]
  %s2 = inlined_call_operand.vmem [shape: f32[1,8], index: 2, kind: input, shape index: {}]
  %s3 = inlined_call_operand.hbm [shape: f32[8,8], index: 3, kind: output, shape index: {}]
  %s4 = sld [smem:[#allocation0]]
  $region22: #{ner_forward.1} parent=0
    _
  %s6 = ssub.s32 1, %s4
  %s7 = scalar_select 0, %s6, %s4
  $region1: #{ner_forward.1} parent=0
    #allocation2 [shape = 'u8[4096]{0}', space=vmem, size = 0x1000, scoped, tag = 'output window, operand 0, single buffered']
    #allocation3 [shape = 's32[1]{0}', space=sflag, size = 0x4, scoped, tag = 'scoped memory for ner_forward.1']
    %8 = vsyncpa [#allocation3], 0
    // Predicated region
    $region2: #{ner_forward.1} parent=1 // pred_check
      _
    $region3: #{ner_forward.1} parent=1 // pred_check_branch
      %10 = sbr.rel (0) target = $region5
    $region4: #{ner_forward.1} parent=1 // pred_region
      _
    $region5: #{ner_forward.1} parent=1 // pred_fallthru
      _
    // Predicated region
    $region6: #{ner_forward.1} parent=1 // pred_check
      _
    $region7: #{ner_forward.1} parent=1 // pred_check_branch
      %12 = sbr.rel (0) target = $region9
    $region8: #{ner_forward.1} parent=1 // pred_region
      _
    $region9: #{ner_forward.1} parent=1 // pred_fallthru
      _
    // Predicated region
    $region10: #{ner_forward.1} parent=1 // pred_check
      _
    $region11: #{ner_forward.1} parent=1 // pred_check_branch
      %14 = sbr.rel (0) target = $region13
    $region12: #{ner_forward.1} parent=1 // pred_region
      _
    $region13: #{ner_forward.1} parent=1 // pred_fallthru
      _
    %v15 = vld [vmem:[%s0] sm:$0xff]
    %v16 = vld [vmem:[%s0 + $0x8] sm:$0xff]
    %v17 = vld [vmem:[%s1] sm:$0xff]
    %v18 = vld [vmem:[%s1 + $0x8] sm:$0xff]
    %v19 = vld [vmem:[%s1 + $0x10] sm:$0xff]
    %v20 = vld [vmem:[%s1 + $0x18] sm:$0xff]
    %v21 = vld [vmem:[%s1 + $0x20] sm:$0xff]
    %v22 = vld [vmem:[%s1 + $0x28] sm:$0xff]
    %v23 = vld [vmem:[%s1 + $0x30] sm:$0xff]
    %v24 = vld [vmem:[%s1 + $0x38] sm:$0xff]
    %v25 = vld [vmem:[%s1 + $0x40] sm:$0xff]
    %v26 = vld [vmem:[%s1 + $0x48] sm:$0xff]
    %v27 = vld [vmem:[%s1 + $0x50] sm:$0xff]
    %v28 = vld [vmem:[%s1 + $0x58] sm:$0xff]
    %v29 = vld [vmem:[%s1 + $0x60] sm:$0xff]
    %v30 = vld [vmem:[%s1 + $0x68] sm:$0xff]
    %v31 = vld [vmem:[%s1 + $0x70] sm:$0xff]
    %v32 = vld [vmem:[%s1 + $0x78] sm:$0xff]
    %v33 = vld [vmem:[%s1 + $0x80] sm:$0xff]
    %v34 = vld [vmem:[%s1 + $0x88] sm:$0xff]
    %v35 = vld [vmem:[%s1 + $0x90] sm:$0xff]
    %v36 = vld [vmem:[%s1 + $0x98] sm:$0xff]
    %v37 = vld [vmem:[%s1 + $0xa0] sm:$0xff]
    %v38 = vld [vmem:[%s1 + $0xa8] sm:$0xff]
    %v39 = vld [vmem:[%s1 + $0xb0] sm:$0xff]
    %v40 = vld [vmem:[%s1 + $0xb8] sm:$0xff]
    %v41 = vld [vmem:[%s1 + $0xc0] sm:$0xff]
    %v42 = vld [vmem:[%s1 + $0xc8] sm:$0xff]
    %v43 = vld [vmem:[%s1 + $0xd0] sm:$0xff]
    %v44 = vld [vmem:[%s1 + $0xd8] sm:$0xff]
    %v45 = vld [vmem:[%s1 + $0xe0] sm:$0xff]
    %v46 = vld [vmem:[%s1 + $0xe8] sm:$0xff]
    %v47 = vld [vmem:[%s1 + $0xf0] sm:$0xff]
    %v48 = vld [vmem:[%s1 + $0xf8] sm:$0x3]
    %v49 = vld [vmem:[%s2] sm:$0x1]
    %v51 = vperm.slane %v49, 0
    %vm53 = vcmask 998400
    %v55 = vsel %vm53, %v16, 0
    %vm57 = vcmask 1041408
    %v59 = vsel %vm57, %v48, 0
    %61 = vmatpush.msra.mxu0 %v32
    %62 = vmatpush.msra.mxu0 %v31
    %63 = vmatpush.msra.mxu0 %v30
    %64 = vmatpush.msra.mxu0 %v29
    %65 = vmatpush.msra.mxu0 %v28
    %66 = vmatpush.msra.mxu0 %v27
    %67 = vmatpush.msra.mxu0 %v26
    %68 = vmatpush.msra.mxu0 %v25
    %69 = vmatpush.msra.mxu0 %v24
    %70 = vmatpush.msra.mxu0 %v23
    %71 = vmatpush.msra.mxu0 %v22
    %72 = vmatpush.msra.mxu0 %v21
    %73 = vmatpush.msra.mxu0 %v20
    %74 = vmatpush.msra.mxu0 %v19
    %75 = vmatpush.msra.mxu0 %v18
    %76 = vmatpush.msra.mxu0 %v17
    %77 = vmatmul.f32.gmra.mxu0 %v15
    %v78 = vpop.f32.mrf.mxu0
    %v79 = vadd.f32 %v51, %v78
    %80 = vdwg.mxu0
    %81 = vmatpush.msra.mxu0 %v59
    %82 = vmatpush.msra.mxu0 %v47
    %83 = vmatpush.msra.mxu0 %v46
    %84 = vmatpush.msra.mxu0 %v45
    %85 = vmatpush.msra.mxu0 %v44
    %86 = vmatpush.msra.mxu0 %v43
    %87 = vmatpush.msra.mxu0 %v42
    %88 = vmatpush.msra.mxu0 %v41
    %89 = vmatpush.msra.mxu0 %v40
    %90 = vmatpush.msra.mxu0 %v39
    %91 = vmatpush.msra.mxu0 %v38
    %92 = vmatpush.msra.mxu0 %v37
    %93 = vmatpush.msra.mxu0 %v36
    %94 = vmatpush.msra.mxu0 %v35
    %95 = vmatpush.msra.mxu0 %v34
    %96 = vmatpush.msra.mxu0 %v33
    %97 = vmatmul.f32.gmra.mxu0 %v55
    %v98 = vpop.f32.mrf.mxu0
    %v99 = vadd.f32 %v79, %v98
    %100 = vdwg.mxu0
    %v101 = vtanh.pop %v99
    %vm102 = vcmask 64512
    %103 = vst.msk [vmem:[#allocation2] sm:$0xff] %vm102, %v101
    // Predicated region
    $region14: #{ner_forward.1} parent=1 // pred_check
      _
    $region15: #{ner_forward.1} parent=1 // pred_check_branch
      %105 = sbr.rel (0) target = $region17
    $region16: #{ner_forward.1} parent=1 // pred_region
      %107 = vsyncadd [#allocation3], 0
      %s109 = sshll.u32 [#allocation2], 4
      %s110 = int_to_ptr.vmem [resolvable:$true] %s109
      %s111 = sshll.u32 %s3, 4
      %s112 = int_to_ptr.hbm [resolvable:$true] %s111
      %114 = dma.vmem_to_hbm [thread:$0]  %s110, 128, %s112, [#allocation3]
    $region17: #{ner_forward.1} parent=1 // pred_fallthru
      _
    // Predicated region
    $region18: #{ner_forward.1} parent=1 // pred_check
      _
    $region19: #{ner_forward.1} parent=1 // pred_check_branch
      %116 = sbr.rel (0) target = $region21
    $region20: #{ner_forward.1} parent=1 // pred_region
      %118 = dma.done [#allocation3], 128
    $region21: #{ner_forward.1} parent=1 // pred_fallthru
      _
    %119 = vsyncpa [#allocation3], 1

</llo_original>
